<compile_context>
chip_gen: v7x
topology: tpu7x:2x2x1
jax: 0.10.0
libtpu: 0.0.40
codegen_flags: <defaults>
</compile_context>

<pallas_src>
import functools

import jax
import jax.numpy as jnp
from jax.experimental import pallas as pl
from jax.experimental.pallas import tpu as pltpu

_LANE = 128
_SUBLANE = 8


def _mse_kernel(p_ref, g_ref, out_ref, acc_ref, *, inv_n):
    """Accumulate sum((p-g)^2) into an (8,128) vreg; finalize to mean."""
    i = pl.program_id(0)

    @pl.when(i == 0)
    def _():
        acc_ref[...] = jnp.zeros_like(acc_ref)

    d = p_ref[...].astype(jnp.float32) - g_ref[...].astype(jnp.float32)  # (tr, 128)
    sq = d * d
    # Reduce (tile_rows, 128) -> (8, 128): vreg-wise VPU adds only, no
    # cross-lane/sublane work until the final step.
    acc_ref[...] += jnp.sum(sq.reshape(-1, _SUBLANE, _LANE), axis=0)

    @pl.when(i == pl.num_programs(0) - 1)
    def _():
        total = jnp.sum(acc_ref[...], keepdims=True)  # (1, 1) single XLU reduce
        out_ref[...] = (total * inv_n).astype(out_ref.dtype)


def mse_loss_pallas(pred, gt, *, max_tile_rows=4096):
    """Mean squared error between two arrays of identical shape -> f32 scalar."""
    assert pred.shape == gt.shape, "pred/gt must have identical shapes"
    n = int(pred.size)

    # Keep native dtype for DMA (cast on-chip); flatten for lane-dense layout.
    p = jnp.ravel(pred)
    g = jnp.ravel(gt)

    # Pad to rows_total x 128 with rows_total = num_tiles * tile_rows and
    # tile_rows a multiple of 8 for (8,128)-aligned, unmasked vector loads.
    rows_needed = max(1, pl.cdiv(n, _LANE))
    tile_rows = int(min(max_tile_rows,
                        ((rows_needed + _SUBLANE - 1) // _SUBLANE) * _SUBLANE))
    num_tiles = int(pl.cdiv(rows_needed, tile_rows))
    rows_total = num_tiles * tile_rows
    padded = rows_total * _LANE
    if padded != n:
        p = jnp.pad(p, (0, padded - n))
        g = jnp.pad(g, (0, padded - n))
    p2 = p.reshape(rows_total, _LANE)
    g2 = g.reshape(rows_total, _LANE)

    bytes_accessed = n * (p2.dtype.itemsize + g2.dtype.itemsize) + 4

    out = pl.pallas_call(
        functools.partial(_mse_kernel, inv_n=1.0 / n),
        out_shape=jax.ShapeDtypeStruct((1, 1), jnp.float32),
        grid_spec=pltpu.PrefetchScalarGridSpec(
            num_scalar_prefetch=0,
            grid=(num_tiles,),
            in_specs=[
                pl.BlockSpec((tile_rows, _LANE), lambda i: (i, 0)),
                pl.BlockSpec((tile_rows, _LANE), lambda i: (i, 0)),
            ],
            out_specs=pl.BlockSpec((1, 1), lambda i: (0, 0)),
            scratch_shapes=[pltpu.VMEM((_SUBLANE, _LANE), jnp.float32)],
        ),
        compiler_params=pltpu.CompilerParams(
            dimension_semantics=("arbitrary",),  # reduction axis (output resident)
        ),
        cost_estimate=pl.CostEstimate(
            flops=3 * n, transcendentals=0, bytes_accessed=bytes_accessed
        ),
    )(p2, g2)
    return out[0, 0]


class GraspLossPallas:
    """JAX/Pallas re-implementation of Grasp_Loss.forward."""

    # TODO(synk): `.to(self.device)` is a no-op here — JAX manages placement.
    def __call__(self, pred_dict, gt_dict):
        return mse_loss_pallas(pred_dict["grasp_state"], gt_dict["grasp_state"])


if __name__ == "__main__":
    key = jax.random.PRNGKey(0)
    k1, k2, k3, k4 = jax.random.split(key, 4)

    # Small shapes implied by the module: grasp_state trajectories, batch=2, seq=8.
    B, S = 2, 8
    pred_dict = {"grasp_state": jax.random.normal(k1, (B, S, 1), jnp.float32)}
    gt_dict = {"grasp_state": jax.random.normal(k2, (B, S, 1), jnp.float32)}

    loss_fn = GraspLossPallas()
    loss = loss_fn(pred_dict, gt_dict)
    jax.block_until_ready(loss)

    ref = jnp.mean((pred_dict["grasp_state"] - gt_dict["grasp_state"]) ** 2)
    assert loss.shape == ()
    assert jnp.allclose(loss, ref, atol=1e-6, rtol=1e-6)

    # Multi-tile sanity check: exercises the pipelined reduction grid (>1 tile).
    big_p = jax.random.normal(k3, (4, 1024, 257), jnp.float32)
    big_g = jax.random.normal(k4, (4, 1024, 257), jnp.float32)
    big_loss = mse_loss_pallas(big_p, big_g)
    jax.block_until_ready(big_loss)
    big_ref = jnp.mean((big_p - big_g) ** 2)
    assert jnp.allclose(big_loss, big_ref, atol=1e-6, rtol=1e-5)

    # bf16 inputs: DMA in native dtype, f32 accumulation on-chip.
    bf_p = big_p.astype(jnp.bfloat16)
    bf_g = big_g.astype(jnp.bfloat16)
    bf_loss = mse_loss_pallas(bf_p, bf_g)
    jax.block_until_ready(bf_loss)
    bf_ref = jnp.mean((bf_p.astype(jnp.float32) - bf_g.astype(jnp.float32)) ** 2)
    assert jnp.allclose(bf_loss, bf_ref, atol=1e-3, rtol=1e-3)

    print("KERNEL_OK")
</pallas_src>

<mosaic_0001>
module attributes {stable_mosaic.version = 11 : i64} {
  func.func @_mse_kernel(%arg0: i32, %arg1: memref<8x128xf32, #tpu.memory_space<vmem>>, %arg2: memref<8x128xf32, #tpu.memory_space<vmem>>, %arg3: memref<1x1xf32, #tpu.memory_space<vmem>>, %arg4: memref<8x128xf32, #tpu.memory_space<vmem>>) attributes {dimension_semantics = [#tpu.dimension_semantics<arbitrary>], iteration_bounds = array<i64: 1>, scalar_prefetch = 0 : i64, scratch_operands = 1 : i64, tpu.core_type = #tpu.core_type<tc>, window_params = [{transform_indices = @transform_0, window_bounds = array<i64: 8, 128>}, {transform_indices = @transform_1, window_bounds = array<i64: 8, 128>}, {pipeline_mode = #tpu.pipeline_mode<synchronous>, transform_indices = @transform_2, window_bounds = array<i64: 1, 1>}]} {
    %c0_i32 = arith.constant 0 : i32
    %0 = arith.cmpi eq, %arg0, %c0_i32 : i32
    %1 = arith.extui %0 : i1 to i32
    %c0_i32_0 = arith.constant 0 : i32
    %2 = arith.cmpi ne, %1, %c0_i32_0 : i32
    scf.if %2 {
      %cst_10 = arith.constant 0.000000e+00 : f32
      %15 = vector.broadcast %cst_10 : f32 to vector<8x128xf32>
      %c0_11 = arith.constant 0 : index
      %c0_12 = arith.constant 0 : index
      %16 = vector.load %arg4[%c0_11, %c0_12] : memref<8x128xf32, #tpu.memory_space<vmem>>, vector<8x128xf32>
      tpu.vector_store %arg4[%c0_11, %c0_12], %15 {strides = array<i32>} : memref<8x128xf32, #tpu.memory_space<vmem>>, vector<8x128xf32>,
    } else {
    }
    %c0 = arith.constant 0 : index
    %c0_1 = arith.constant 0 : index
    %3 = vector.load %arg1[%c0, %c0_1] : memref<8x128xf32, #tpu.memory_space<vmem>>, vector<8x128xf32>
    %c0_2 = arith.constant 0 : index
    %c0_3 = arith.constant 0 : index
    %4 = vector.load %arg2[%c0_2, %c0_3] : memref<8x128xf32, #tpu.memory_space<vmem>>, vector<8x128xf32>
    %5 = arith.subf %3, %4 : vector<8x128xf32>
    %6 = arith.mulf %5, %5 : vector<8x128xf32>
    %c0_4 = arith.constant 0 : index
    %c0_5 = arith.constant 0 : index
    %7 = vector.load %arg4[%c0_4, %c0_5] : memref<8x128xf32, #tpu.memory_space<vmem>>, vector<8x128xf32>
    %8 = vector.shape_cast %6 : vector<8x128xf32> to vector<1x8x128xf32>
    %cst = arith.constant dense<0.000000e+00> : vector<8x128xf32>
    %9 = vector.multi_reduction <add>, %8, %cst [0] : vector<1x8x128xf32> to vector<8x128xf32>
    %10 = arith.addf %7, %9 : vector<8x128xf32>
    %c0_6 = arith.constant 0 : index
    %c0_7 = arith.constant 0 : index
    %11 = vector.load %arg4[%c0_6, %c0_7] : memref<8x128xf32, #tpu.memory_space<vmem>>, vector<8x128xf32>
    tpu.vector_store %arg4[%c0_6, %c0_7], %10 {strides = array<i32>} : memref<8x128xf32, #tpu.memory_space<vmem>>, vector<8x128xf32>,
    %c0_i32_8 = arith.constant 0 : i32
    %12 = arith.cmpi eq, %arg0, %c0_i32_8 : i32
    %13 = arith.extui %12 : i1 to i32
    %c0_i32_9 = arith.constant 0 : i32
    %14 = arith.cmpi ne, %13, %c0_i32_9 : i32
    scf.if %14 {
      %c0_10 = arith.constant 0 : index
      %c0_11 = arith.constant 0 : index
      %15 = vector.load %arg4[%c0_10, %c0_11] : memref<8x128xf32, #tpu.memory_space<vmem>>, vector<8x128xf32>
      %16 = vector.shape_cast %15 : vector<8x128xf32> to vector<1x8x128xf32>
      %cst_12 = arith.constant dense<0.000000e+00> : vector<1xf32>
      %17 = vector.multi_reduction <add>, %16, %cst_12 [1, 2] : vector<1x8x128xf32> to vector<1xf32>
      %18 = vector.shape_cast %17 : vector<1xf32> to vector<1x1x1xf32>
      %19 = vector.extract %18[0, 0, 0] : f32 from vector<1x1x1xf32>
      %20 = vector.broadcast %19 : f32 to vector<1x1xf32>
      %cst_13 = arith.constant 6.250000e-02 : f32
      %21 = vector.broadcast %cst_13 : f32 to vector<1x1xf32>
      %22 = arith.mulf %20, %21 : vector<1x1xf32>
      %c0_14 = arith.constant 0 : index
      %c0_15 = arith.constant 0 : index
      %23 = vector.load %arg3[%c0_14, %c0_15] : memref<1x1xf32, #tpu.memory_space<vmem>>, vector<1x1xf32>
      tpu.vector_store %arg3[%c0_14, %c0_15], %22 {strides = array<i32>} : memref<1x1xf32, #tpu.memory_space<vmem>>, vector<1x1xf32>,
    } else {
    }
    return
  }
  func.func @transform_0(%arg0: i32) -> (i32, i32) {
    %c0_i32 = arith.constant 0 : i32
    %c0_i32_0 = arith.constant 0 : i32
    return %arg0, %c0_i32 : i32, i32
  }
  func.func @transform_1(%arg0: i32) -> (i32, i32) {
    %c0_i32 = arith.constant 0 : i32
    %c0_i32_0 = arith.constant 0 : i32
    return %arg0, %c0_i32 : i32, i32
  }
  func.func @transform_2(%arg0: i32) -> (i32, i32) {
    %c0_i32 = arith.constant 0 : i32
    %c0_i32_0 = arith.constant 0 : i32
    %c0_i32_1 = arith.constant 0 : i32
    return %c0_i32, %c0_i32_0 : i32, i32
  }
}

</mosaic_0001>

<llo_original>
// kernel: tpu_custom_call.1
$region0: #{tpu_custom_call.1}
  #allocation0 [shape = 'u32[]', space=smem, size = 0x4, offset = 0x4, fixed_abs, tag = 'smem constant byte address 0x4 - core index']
  #allocation1 [shape = 'u32[144,128]{1,0:T(1,128)}', space=vmem, size = 0x12000, scoped, tag = 'internal scratch']
  #allocation2 [shape = 'f32[8,128]{1,0:T(8,128)}', space=vmem, size = 0x1000, scoped, tag = 'scratch operand']
  %s0 = inlined_call_operand.hbm [shape: f32[8,128], index: 0, kind: input, shape index: {}]
  %s1 = inlined_call_operand.hbm [shape: f32[8,128], index: 1, kind: input, shape index: {}]
  %s2 = inlined_call_operand.hbm [shape: f32[1,1], index: 2, kind: output, shape index: {}]
  %s3 = sld [smem:[#allocation0]]
  $region34: #{tpu_custom_call.1} parent=0
    _
  %s5 = ssub.s32 1, %s3
  %s6 = scalar_select 0, %s5, %s3
  $region1: #{tpu_custom_call.1} parent=0
    #allocation3 [shape = 'u8[4096]{0}', space=vmem, size = 0x1000, scoped, tag = 'input window, operand 0, single buffered']
    #allocation4 [shape = 's32[1]{0}', space=sflag, size = 0x4, scoped, tag = 'scoped memory for tpu_custom_call.1']
    #allocation5 [shape = 's32[1]{0}', space=sflag, size = 0x4, scoped, tag = 'scoped memory for tpu_custom_call.1']
    #allocation6 [shape = 'u8[4096]{0}', space=vmem, size = 0x1000, scoped, tag = 'input window, operand 1, single buffered']
    #allocation7 [shape = 's32[1]{0}', space=sflag, size = 0x4, scoped, tag = 'scoped memory for tpu_custom_call.1']
    #allocation8 [shape = 'u8[512]{0}', space=vmem, size = 0x400, scoped, tag = 'output window, operand 0, single buffered']
    %7 = vsyncpa [#allocation4], 0
    %8 = vsyncpa [#allocation7], 0
    %9 = vsyncpa [#allocation5], 0
    // Predicated region
    $region2: #{tpu_custom_call.1} parent=1 // pred_check
      _
    $region3: #{tpu_custom_call.1} parent=1 // pred_check_branch
      %11 = sbr.rel (0) target = $region5
    $region4: #{tpu_custom_call.1} parent=1 // pred_region
      %s13 = ssub.s32 128, 128
      %14 = vsyncadd [#allocation4], %s13
      %s16 = sshll.u32 [#allocation3], 4
      %s17 = int_to_ptr.vmem [resolvable:$true] %s16
      %19 = dma.hbm_to_vmem [thread:$0]  %s0, 128, %s17, [#allocation4]
    $region5: #{tpu_custom_call.1} parent=1 // pred_fallthru
      _
    // Predicated region
    $region6: #{tpu_custom_call.1} parent=1 // pred_check
      _
    $region7: #{tpu_custom_call.1} parent=1 // pred_check_branch
      %21 = sbr.rel (0) target = $region9
    $region8: #{tpu_custom_call.1} parent=1 // pred_region
      %s23 = ssub.s32 128, 128
      %24 = vsyncadd [#allocation7], %s23
      %s26 = sshll.u32 [#allocation6], 4
      %s27 = int_to_ptr.vmem [resolvable:$true] %s26
      %29 = dma.hbm_to_vmem [thread:$0]  %s1, 128, %s27, [#allocation7]
    $region9: #{tpu_custom_call.1} parent=1 // pred_fallthru
      _
    // Predicated region
    $region10: #{tpu_custom_call.1} parent=1 // pred_check
      _
    $region11: #{tpu_custom_call.1} parent=1 // pred_check_branch
      %31 = sbr.rel (0) target = $region13
    $region12: #{tpu_custom_call.1} parent=1 // pred_region
      %32 = dma.done [#allocation4], 128
    $region13: #{tpu_custom_call.1} parent=1 // pred_fallthru
      _
    // Predicated region
    $region14: #{tpu_custom_call.1} parent=1 // pred_check
      _
    $region15: #{tpu_custom_call.1} parent=1 // pred_check_branch
      %34 = sbr.rel (0) target = $region17
    $region16: #{tpu_custom_call.1} parent=1 // pred_region
      %35 = dma.done [#allocation7], 128
    $region17: #{tpu_custom_call.1} parent=1 // pred_fallthru
      _
    %p36 = scmp.eq.s32.totalorder 0, 0
    // Predicated region
    $region18: #{tpu_custom_call.1} parent=1 // pred_check
      %p37 = pneg %p36
    $region19: #{tpu_custom_call.1} parent=1 // pred_check_branch
      %39 = sbr.rel (%p37) target = $region21
    $region20: #{tpu_custom_call.1} parent=1 // pred_region
      %40 = vst [vmem:[#allocation2] sm:$0xff] 0.0
    $region21: #{tpu_custom_call.1} parent=1 // pred_fallthru
      _
    %v41 = vld [vmem:[#allocation3] sm:$0xff]
    %v42 = vld [vmem:[#allocation6] sm:$0xff]
    %v43 = vsub.f32 %v41, %v42
    %v44 = vmul.f32 %v43, %v43
    %v45 = vld [vmem:[#allocation2] sm:$0xff]
    %v46 = vadd.f32 %v44, 0.0
    %v47 = vadd.f32 %v45, %v46
    %48 = vst [vmem:[#allocation2] sm:$0xff] %v47
    // Predicated region
    $region22: #{tpu_custom_call.1} parent=1 // pred_check
      %p49 = pneg %p36
    $region23: #{tpu_custom_call.1} parent=1 // pred_check_branch
      %51 = sbr.rel (%p49) target = $region25
    $region24: #{tpu_custom_call.1} parent=1 // pred_region
      %v52 = vld [vmem:[#allocation2] sm:$0xff]
      %53 = vadd.xlane.f32.xlu0 %v52
      %v54 = vpop.xlane.xlu0 %53
      %v55 = vrot.slane %v54, 4
      %v56 = vadd.f32 %v54, %v55
      %v57 = vrot.slane %v56, 2
      %v58 = vadd.f32 %v56, %v57
      %v59 = vrot.slane %v58, 1
      %v60 = vadd.f32 %v58, %v59
      %s61 = vtos %v60
      %v62 = vstv %s61
      %v63 = vmul.f32 %v62, 0.0625
      %vm64 = vcmask 0
      %65 = vst.msk [vmem:[#allocation8] sm:$0x1] %vm64, %v63
    $region25: #{tpu_custom_call.1} parent=1 // pred_fallthru
      _
    // Predicated region
    $region26: #{tpu_custom_call.1} parent=1 // pred_check
      _
    $region27: #{tpu_custom_call.1} parent=1 // pred_check_branch
      %67 = sbr.rel (0) target = $region29
    $region28: #{tpu_custom_call.1} parent=1 // pred_region
      %s69 = ssub.s32 16, 16
      %70 = vsyncadd [#allocation5], %s69
      %s72 = sshll.u32 [#allocation8], 4
      %s73 = int_to_ptr.vmem [resolvable:$true] %s72
      %75 = dma.vmem_to_hbm [thread:$0]  %s73, 16, %s2, [#allocation5]
    $region29: #{tpu_custom_call.1} parent=1 // pred_fallthru
      _
    // Predicated region
    $region30: #{tpu_custom_call.1} parent=1 // pred_check
      _
    $region31: #{tpu_custom_call.1} parent=1 // pred_check_branch
      %77 = sbr.rel (0) target = $region33
    $region32: #{tpu_custom_call.1} parent=1 // pred_region
      %78 = dma.done [#allocation5], 16
    $region33: #{tpu_custom_call.1} parent=1 // pred_fallthru
      _
    %79 = vsyncpa [#allocation4], 1
    %80 = vsyncpa [#allocation7], 1
    %81 = vsyncpa [#allocation5], 1

</llo_original>
